<compile_context>
chip_gen: v6e
topology: v6e:2x2x1
jax: 0.10.0
libtpu: 0.0.40
codegen_flags: <defaults>
</compile_context>

<pallas_src>
import jax
import jax.numpy as jnp
from jax.experimental import pallas as pl
from jax.experimental.pallas import tpu as pltpu

_LANES = 128
_SUBLANES = 8
_TARGET_BLOCK_BYTES = 2 * 1024 * 1024   # ~2 MiB/block -> 7 blocks ~= 14 MiB VMEM
_VMEM_LIMIT_BYTES = 32 * 1024 * 1024    # safe on v5e/v6e (128 MiB phys) and v7x (64 MiB)


def _crosstalk_kernel(strength_ref, x_ref, xlast_ref, o_ref, carry_ref):
    """out[b, tile] = x[b, tile] + x[(b-1) % N, tile] * strength.

    carry_ref holds x[b-1, tile] from the previous batch step.  This is only
    valid because the batch axis is the innermost, sequentially iterated
    ("arbitrary") grid axis; the tile axis is the one that may be core-split.
    Do NOT reorder the grid or mark the batch axis "parallel".
    """
    b = pl.program_id(1)
    n_b = pl.num_programs(1)

    @pl.when(b == 0)
    def _():
        # Seed the carry with the wrap block x[N-1, tile].
        carry_ref[...] = xlast_ref[...]

    s = strength_ref[0].astype(x_ref.dtype)
    o_ref[...] = x_ref[...] + carry_ref[...] * s

    # Carry x[b] forward as the next batch step's "rolled" block; dead work on
    # the last batch step of each tile (the next tile reseeds at b == 0).
    @pl.when(b != n_b - 1)
    def _():
        carry_ref[...] = x_ref[...]


def _select_tile_sublanes(S, pack, cap_sublanes, want_min_tiles=2):
    """Pick the sublane extent of a (1, ts, 128) block.

    Preferences: blocks within the byte cap; >= 2 tiles (v7x megacore) when S
    is large enough; a split that divides S exactly (no masked last tile);
    otherwise as even as possible.  ts is a multiple of `pack` unless it is
    the full axis (which is exempt from the multiple-of-8 rule).
    """
    if S <= pack:
        return S
    cap = max(pack, (cap_sublanes // pack) * pack)
    min_tiles = -(-S // cap)
    if S >= want_min_tiles * pack:
        min_tiles = max(min_tiles, want_min_tiles)
    # Prefer the fewest tiles whose pack-rounded even split divides S exactly.
    for n in range(min_tiles, min(S // pack, min_tiles + 8) + 1):
        ts = -(-S // n)
        ts = ((ts + pack - 1) // pack) * pack
        if ts <= cap and S % ts == 0:
            return ts
    # Fall back: as-even-as-possible split (last tile may be ragged/masked).
    ts = -(-S // min_tiles)
    ts = min(cap, ((ts + pack - 1) // pack) * pack)
    return min(ts, S)


def cross_talk(x, strength=0.2, training=True, *, max_block_bytes=_TARGET_BLOCK_BYTES):
    """JAX/Pallas equivalent of CrossTalk.forward for an (N, C, H, W) array."""
    # The training/strength branch must be static: a traced value here would
    # either fail or silently pick the wrong branch.
    if isinstance(strength, jax.core.Tracer):
        raise TypeError(
            "cross_talk: `strength` must be a static Python number; hoist the "
            "training/strength check out of the traced region.")
    strength = float(strength)
    if not (training and strength):
        return x  # eval mode / zero strength: identity
    if not jnp.issubdtype(x.dtype, jnp.floating):
        raise TypeError("cross_talk expects a floating-point input dtype.")

    orig_shape = x.shape
    N = int(orig_shape[0])
    F = 1
    for d in orig_shape[1:]:
        F *= int(d)

    xf = x.reshape(N, F)                 # free (bitcast)
    S = F // _LANES                      # rows of the 128-aligned prefix
    F_main = S * _LANES
    tail = F - F_main

    itemsize = jnp.dtype(x.dtype).itemsize
    pack = max(_SUBLANES, 32 // itemsize)   # 8 f32, 16 bf16, 32 int8-width

    outputs = []

    if S > 0:
        x_main = xf[:, :F_main].reshape(N, S, _LANES)   # full slice is free when tail == 0
        cap_sublanes = max(pack, max_block_bytes // (_LANES * itemsize))
        ts = _select_tile_sublanes(S, pack, cap_sublanes)
        n_tiles = pl.cdiv(S, ts)

        strength_arr = jnp.full((1,), strength, dtype=jnp.float32)
        bytes_accessed = int((2 * N + 1) * F_main * itemsize)  # 1R + 1W + 1/N wrap

        out_main = pl.pallas_call(
            _crosstalk_kernel,
            out_shape=jax.ShapeDtypeStruct((N, S, _LANES), x.dtype),
            grid_spec=pltpu.PrefetchScalarGridSpec(
                num_scalar_prefetch=0,
                # Batch MUST stay the innermost ("arbitrary") axis so the VMEM
                # carry is valid; tiles are the outer "parallel" axis (v7x
                # megacore split happens on this axis only).
                grid=(n_tiles, N),
                in_specs=[
                    # strength scalar, lives in SMEM (no recompile per value).
                    pl.BlockSpec(memory_space=pltpu.MemorySpace.SMEM),
                    # x[b, tile]
                    pl.BlockSpec((1, ts, _LANES), lambda t, b: (b, t, 0)),
                    # wrap block x[N-1, tile]: index depends only on t, so the
                    # pipeline fetches it once per tile (1/N extra read).
                    pl.BlockSpec((1, ts, _LANES), lambda t, b: (N - 1, t, 0)),
                    # NOTE: pipeline_mode=pl.Buffered(3) on the x spec is a
                    # possible <=5% win for large n_tiles; measure before use.
                ],
                out_specs=pl.BlockSpec((1, ts, _LANES), lambda t, b: (b, t, 0)),
                scratch_shapes=[pltpu.VMEM((1, ts, _LANES), x.dtype)],
            ),
            compiler_params=pltpu.CompilerParams(
                dimension_semantics=("parallel", "arbitrary"),
                vmem_limit_bytes=_VMEM_LIMIT_BYTES,
            ),
            cost_estimate=pl.CostEstimate(
                flops=2 * N * F_main,
                transcendentals=0,
                bytes_accessed=bytes_accessed,
            ),
        )(strength_arr, x_main, x_main)
        outputs.append(out_main.reshape(N, F_main))

    if tail > 0:
        # <=127 features per row: handled in plain JAX (negligible HBM traffic).
        x_tail = xf[:, F_main:]
        rolled_tail = jnp.concatenate([x_tail[-1:], x_tail[:-1]], axis=0)
        outputs.append(x_tail + rolled_tail * jnp.asarray(strength, dtype=x.dtype))

    out = outputs[0] if len(outputs) == 1 else jnp.concatenate(outputs, axis=1)
    return out.reshape(orig_shape)


def _reference(x, strength):
    rolled = jnp.concatenate([x[-1:], x[:-1]], axis=0)
    return x + rolled * strength


if __name__ == "__main__":
    strength = 0.2  # module __init__ default

    # Main test shape (small, matches the module's NCHW contract).
    key = jax.random.PRNGKey(0)
    N, C, H, W = 2, 4, 16, 16
    x = jax.random.normal(key, (N, C, H, W), dtype=jnp.float32)

    out = jax.block_until_ready(cross_talk(x, strength=strength, training=True))
    ref = _reference(x, strength)
    assert out.shape == x.shape and out.dtype == x.dtype
    assert jnp.allclose(out, ref, atol=1e-6, rtol=1e-6)

    # Eval mode: identity.
    out_eval = jax.block_until_ready(cross_talk(x, strength=strength, training=False))
    assert jnp.array_equal(out_eval, x)

    # Non-128-aligned feature size (exercises the aligned-prefix + JAX-tail path).
    x2 = jax.random.normal(jax.random.PRNGKey(1), (3, 3, 9, 11), dtype=jnp.float32)
    out2 = jax.block_until_ready(cross_talk(x2, strength=strength, training=True))
    assert jnp.allclose(out2, _reference(x2, strength), atol=1e-6, rtol=1e-6)

    # Multi-tile grid with a ragged last tile (small block cap forces n_tiles > 1),
    # exercising the VMEM carry + per-tile wrap re-fetch path.
    x3 = jax.random.normal(jax.random.PRNGKey(2), (3, 4, 8, 60), dtype=jnp.float32)
    out3 = jax.block_until_ready(
        cross_talk(x3, strength=strength, training=True,
                   max_block_bytes=8 * _LANES * 4)
    )
    assert jnp.allclose(out3, _reference(x3, strength), atol=1e-6, rtol=1e-6)

    # Larger aligned shape: tile selector forces an even 2-way split (v7x megacore).
    x4 = jax.random.normal(jax.random.PRNGKey(3), (2, 64, 32, 32), dtype=jnp.float32)
    out4 = jax.block_until_ready(cross_talk(x4, strength=strength, training=True))
    assert jnp.allclose(out4, _reference(x4, strength), atol=1e-6, rtol=1e-6)

    # bf16 input (dtype-scaled sublane packing) and tiny feature size (< 128,
    # pure-JAX fallback path).
    x5 = jax.random.normal(jax.random.PRNGKey(4), (4, 8, 16, 16)).astype(jnp.bfloat16)
    out5 = jax.block_until_ready(cross_talk(x5, strength=strength, training=True))
    assert jnp.allclose(out5.astype(jnp.float32),
                        _reference(x5.astype(jnp.float32), strength),
                        atol=2e-2, rtol=2e-2)
    x6 = jax.random.normal(jax.random.PRNGKey(5), (2, 3, 5, 5), dtype=jnp.float32)
    out6 = jax.block_until_ready(cross_talk(x6, strength=strength, training=True))
    assert jnp.allclose(out6, _reference(x6, strength), atol=1e-6, rtol=1e-6)

    print("KERNEL_OK")
</pallas_src>

<mosaic_0001>
module attributes {stable_mosaic.version = 11 : i64} {
  func.func @_crosstalk_kernel(%arg0: i32, %arg1: i32, %arg2: memref<1xf32, #tpu.memory_space<smem>>, %arg3: memref<1x8x128xf32, #tpu.memory_space<vmem>>, %arg4: memref<1x8x128xf32, #tpu.memory_space<vmem>>, %arg5: memref<1x8x128xf32, #tpu.memory_space<vmem>>, %arg6: memref<1x8x128xf32, #tpu.memory_space<vmem>>) attributes {dimension_semantics = [#tpu.dimension_semantics<parallel>, #tpu.dimension_semantics<arbitrary>], iteration_bounds = array<i64: 1, 2>, scalar_prefetch = 0 : i64, scratch_operands = 1 : i64, tpu.core_type = #tpu.core_type<tc>, window_params = [{transform_indices = @transform_0, window_bounds = array<i64: 1>}, {transform_indices = @transform_1, window_bounds = array<i64: 1, 8, 128>}, {transform_indices = @transform_2, window_bounds = array<i64: 1, 8, 128>}, {transform_indices = @transform_3, window_bounds = array<i64: 1, 8, 128>}]} {
    %c0_i32 = arith.constant 0 : i32
    %0 = arith.cmpi eq, %arg1, %c0_i32 : i32
    %1 = arith.extui %0 : i1 to i32
    %c0_i32_0 = arith.constant 0 : i32
    %2 = arith.cmpi ne, %1, %c0_i32_0 : i32
    scf.if %2 {
      %c0_11 = arith.constant 0 : index
      %c0_12 = arith.constant 0 : index
      %c0_13 = arith.constant 0 : index
      %13 = vector.load %arg4[%c0_11, %c0_12, %c0_13] : memref<1x8x128xf32, #tpu.memory_space<vmem>>, vector<1x8x128xf32>
      %c0_14 = arith.constant 0 : index
      %c0_15 = arith.constant 0 : index
      %c0_16 = arith.constant 0 : index
      %14 = vector.load %arg6[%c0_14, %c0_15, %c0_16] : memref<1x8x128xf32, #tpu.memory_space<vmem>>, vector<1x8x128xf32>
      tpu.vector_store %arg6[%c0_14, %c0_15, %c0_16], %13 {strides = array<i32>} : memref<1x8x128xf32, #tpu.memory_space<vmem>>, vector<1x8x128xf32>,
    } else {
    }
    %c0 = arith.constant 0 : index
    %3 = memref.load %arg2[%c0] : memref<1xf32, #tpu.memory_space<smem>>
    %c0_1 = arith.constant 0 : index
    %c0_2 = arith.constant 0 : index
    %c0_3 = arith.constant 0 : index
    %4 = vector.load %arg3[%c0_1, %c0_2, %c0_3] : memref<1x8x128xf32, #tpu.memory_space<vmem>>, vector<1x8x128xf32>
    %c0_4 = arith.constant 0 : index
    %c0_5 = arith.constant 0 : index
    %c0_6 = arith.constant 0 : index
    %5 = vector.load %arg6[%c0_4, %c0_5, %c0_6] : memref<1x8x128xf32, #tpu.memory_space<vmem>>, vector<1x8x128xf32>
    %6 = vector.broadcast %3 : f32 to vector<1x8x128xf32>
    %7 = arith.mulf %5, %6 : vector<1x8x128xf32>
    %8 = arith.addf %4, %7 : vector<1x8x128xf32>
    %c0_7 = arith.constant 0 : index
    %c0_8 = arith.constant 0 : index
    %c0_9 = arith.constant 0 : index
    %9 = vector.load %arg5[%c0_7, %c0_8, %c0_9] : memref<1x8x128xf32, #tpu.memory_space<vmem>>, vector<1x8x128xf32>
    tpu.vector_store %arg5[%c0_7, %c0_8, %c0_9], %8 {strides = array<i32>} : memref<1x8x128xf32, #tpu.memory_space<vmem>>, vector<1x8x128xf32>,
    %c1_i32 = arith.constant 1 : i32
    %10 = arith.cmpi ne, %arg1, %c1_i32 : i32
    %11 = arith.extui %10 : i1 to i32
    %c0_i32_10 = arith.constant 0 : i32
    %12 = arith.cmpi ne, %11, %c0_i32_10 : i32
    scf.if %12 {
      %c0_11 = arith.constant 0 : index
      %c0_12 = arith.constant 0 : index
      %c0_13 = arith.constant 0 : index
      %13 = vector.load %arg3[%c0_11, %c0_12, %c0_13] : memref<1x8x128xf32, #tpu.memory_space<vmem>>, vector<1x8x128xf32>
      %c0_14 = arith.constant 0 : index
      %c0_15 = arith.constant 0 : index
      %c0_16 = arith.constant 0 : index
      %14 = vector.load %arg6[%c0_14, %c0_15, %c0_16] : memref<1x8x128xf32, #tpu.memory_space<vmem>>, vector<1x8x128xf32>
      tpu.vector_store %arg6[%c0_14, %c0_15, %c0_16], %13 {strides = array<i32>} : memref<1x8x128xf32, #tpu.memory_space<vmem>>, vector<1x8x128xf32>,
    } else {
    }
    return
  }
  func.func @transform_0(%arg0: i32, %arg1: i32) -> i32 {
    %c0_i32 = arith.constant 0 : i32
    %c0_i32_0 = arith.constant 0 : i32
    return %c0_i32 : i32
  }
  func.func @transform_1(%arg0: i32, %arg1: i32) -> (i32, i32, i32) {
    %c0_i32 = arith.constant 0 : i32
    %c0_i32_0 = arith.constant 0 : i32
    return %arg1, %arg0, %c0_i32 : i32, i32, i32
  }
  func.func @transform_2(%arg0: i32, %arg1: i32) -> (i32, i32, i32) {
    %c1_i32 = arith.constant 1 : i32
    %c0_i32 = arith.constant 0 : i32
    %c0_i32_0 = arith.constant 0 : i32
    return %c1_i32, %arg0, %c0_i32 : i32, i32, i32
  }
  func.func @transform_3(%arg0: i32, %arg1: i32) -> (i32, i32, i32) {
    %c0_i32 = arith.constant 0 : i32
    %c0_i32_0 = arith.constant 0 : i32
    return %arg1, %arg0, %c0_i32 : i32, i32, i32
  }
}

</mosaic_0001>

<llo_original>
// kernel: tpu_custom_call.1
$region0: #{tpu_custom_call.1}
  #allocation0 [shape = 'u32[]', space=smem, size = 0x4, offset = 0x4, fixed_abs, tag = 'smem constant byte address 0x4 - core index']
  #allocation1 [shape = 'u32[144,128]{1,0:T(1,128)}', space=vmem, size = 0x12000, scoped, tag = 'internal scratch']
  #allocation2 [shape = 'f32[1,8,128]{2,1,0:T(8,128)}', space=vmem, size = 0x1000, scoped, tag = 'scratch operand']
  #allocation3 [shape = 'f32[1]{0:T(128)S(6)}', space=smem, size = 0x200, scoped, tag = 'scoped memory for tpu_custom_call.1']
  %s0 = inlined_call_operand.<no memory space> [shape: f32[1], index: 0, kind: input, shape index: {}]
  %s1 = inlined_call_operand.hbm [shape: f32[2,8,128], index: 1, kind: input, shape index: {}]
  %s2 = inlined_call_operand.hbm [shape: f32[2,8,128], index: 2, kind: input, shape index: {}]
  %s3 = inlined_call_operand.hbm [shape: f32[2,8,128], index: 3, kind: output, shape index: {}]
  %s4 = sld [smem:[#allocation0]]
  $region61: #{tpu_custom_call.1} parent=0
    _
  %s6 = ssub.s32 1, %s4
  %s7 = scalar_select 0, %s6, %s4
  %8 = sst [smem:[#allocation3]] %s0
  $region1: #{tpu_custom_call.1} parent=0
    #allocation4 [shape = 'u8[8192]{0}', space=vmem, size = 0x2000, scoped, tag = 'input window, operand 1']
    #allocation5 [shape = 's32[2]{0}', space=sflag, size = 0x8, scoped, tag = 'scoped memory for tpu_custom_call.1']
    #allocation6 [shape = 's32[2]{0}', space=sflag, size = 0x8, scoped, tag = 'scoped memory for tpu_custom_call.1']
    #allocation7 [shape = 'u8[4096]{0}', space=vmem, size = 0x1000, scoped, tag = 'input window, operand 2, single buffered']
    #allocation8 [shape = 's32[1]{0}', space=sflag, size = 0x4, scoped, tag = 'scoped memory for tpu_custom_call.1']
    #allocation9 [shape = 'u8[8192]{0}', space=vmem, size = 0x2000, scoped, tag = 'output window, operand 0']
    %9 = vsyncpa [#allocation5], 0
    %s10 = scalar_lea.sflag [#allocation5], 1
    %11 = vsyncpa %s10, 0
    %12 = vsyncpa [#allocation8], 0
    %13 = vsyncpa [#allocation6], 0
    %s14 = scalar_lea.sflag [#allocation6], 1
    %15 = vsyncpa %s14, 0
    loop: start=0, step=1, limit=4
    $region2: #{tpu_custom_call.1} parent=1 // loop_pre_header
      _
    $region3: #{tpu_custom_call.1} parent=1 // loop_header
      %s17 = sphi 0, %s21
      %p18 = scmp.ge.s32.totalorder %s17, 4
      %s24 = sphi 0, %s36
      %s25 = sphi 0, %s32
      %s26 = sphi 0, %s24
      %s27 = sphi 0, %s25
      %s28 = sphi 0, %s26
      %s29 = sphi 0, %s27
      %s37 = sphi 0, %s37
      %s39 = sphi 0, %s37
      %s40 = sphi 0, %s39
      %s54 = sphi 0, %s40
      %s62 = sphi 0, %s64
      %s65 = sphi 0, %s62
      %s66 = sphi 0, %s65
      %s82 = sphi 0, %s66
      %s88 = sphi 0, %s90
      %s91 = sphi 0, %s88
      %s92 = sphi 0, %s91
      %s108 = sphi 0, %s92
      %s116 = sphi 0, %s118
      %s119 = sphi 0, %s116
      %s120 = sphi 0, %s119
      %s136 = sphi 0, %s120
    $region4: #{tpu_custom_call.1} parent=1 // loop_header_branch
      %20 = sbr.rel (%p18) target = $region8
    $region5: #{tpu_custom_call.1} parent=1 // loop_body
      %s22 = ssub.s32 %s17, 1
      %s23 = ssub.s32 %s17, 2
      %s30 = sadd.s32 1, %s25
      %p31 = scmp.ge.s32.totalorder %s30, 2
      %s32 = scalar_select %p31, 0, %s30
      %s33 = sadd.s32 1, %s24
      %s34 = scalar_select %p31, %s33, %s24
      %p35 = scmp.ge.s32.totalorder %s34, 1
      %s36 = scalar_select %p35, 0, %s34
      %s38 = sadd.s32 %s37, 1
      %p41 = scmp.eq.s32.totalorder %s17, 1
      %p42 = scmp.ne.s32.totalorder %s37, %s39
      %p43 = scmp.eq.s32.totalorder %s17, 0
      %p44 = por %p42, %p43
      %p45 = scmp.ne.s32.totalorder %s37, %s39
      %p46 = scmp.eq.s32.totalorder %s22, 1
      %p47 = por %p45, %p46
      %p48 = scmp.ne.s32.totalorder %s39, %s40
      %p49 = scmp.eq.s32.totalorder %s22, 0
      %p50 = por %p48, %p49
      %p51 = scmp.ne.s32.totalorder %s39, %s40
      %p52 = scmp.eq.s32.totalorder %s23, 1
      %p53 = por %p51, %p52
      %p55 = scmp.ne.s32.totalorder %s40, %s54
      %p56 = scmp.eq.s32.totalorder %s23, 0
      %p57 = por %p55, %p56
      %s58 = ssub.s32 %s25, %s32
      %s59 = ssub.s32 %s24, %s36
      %s60 = sor.u32 %s58, %s59
      %p61 = scmp.eq.s32.totalorder %s60, 0
      %s63 = sadd.s32 %s62, 1
      %s64 = scalar_select %p61, %s62, %s63
      %p67 = pneg %p61
      %p68 = scmp.eq.s32.totalorder %s17, 1
      %p69 = por %p67, %p68
      %p70 = scmp.ne.s32.totalorder %s62, %s65
      %p71 = scmp.eq.s32.totalorder %s17, 0
      %p72 = por %p70, %p71
      %p73 = scmp.ne.s32.totalorder %s62, %s65
      %p74 = scmp.eq.s32.totalorder %s22, 1
      %p75 = por %p73, %p74
      %p76 = scmp.ne.s32.totalorder %s65, %s66
      %p77 = scmp.eq.s32.totalorder %s22, 0
      %p78 = por %p76, %p77
      %p79 = scmp.ne.s32.totalorder %s65, %s66
      %p80 = scmp.eq.s32.totalorder %s23, 1
      %p81 = por %p79, %p80
      %p83 = scmp.ne.s32.totalorder %s66, %s82
      %p84 = scmp.eq.s32.totalorder %s23, 0
      %p85 = por %p83, %p84
      %s86 = ssub.s32 %s24, %s36
      %p87 = scmp.eq.s32.totalorder %s86, 0
      %s89 = sadd.s32 %s88, 1
      %s90 = scalar_select %p87, %s88, %s89
      %p93 = pneg %p87
      %p94 = scmp.eq.s32.totalorder %s17, 1
      %p95 = por %p93, %p94
      %p96 = scmp.ne.s32.totalorder %s88, %s91
      %p97 = scmp.eq.s32.totalorder %s17, 0
      %p98 = por %p96, %p97
      %p99 = scmp.ne.s32.totalorder %s88, %s91
      %p100 = scmp.eq.s32.totalorder %s22, 1
      %p101 = por %p99, %p100
      %p102 = scmp.ne.s32.totalorder %s91, %s92
      %p103 = scmp.eq.s32.totalorder %s22, 0
      %p104 = por %p102, %p103
      %p105 = scmp.ne.s32.totalorder %s91, %s92
      %p106 = scmp.eq.s32.totalorder %s23, 1
      %p107 = por %p105, %p106
      %p109 = scmp.ne.s32.totalorder %s92, %s108
      %p110 = scmp.eq.s32.totalorder %s23, 0
      %p111 = por %p109, %p110
      %s112 = ssub.s32 %s25, %s32
      %s113 = ssub.s32 %s24, %s36
      %s114 = sor.u32 %s112, %s113
      %p115 = scmp.eq.s32.totalorder %s114, 0
      %s117 = sadd.s32 %s116, 1
      %s118 = scalar_select %p115, %s116, %s117
      %p121 = pneg %p115
      %p122 = scmp.eq.s32.totalorder %s17, 1
      %p123 = por %p121, %p122
      %p124 = scmp.ne.s32.totalorder %s116, %s119
      %p125 = scmp.eq.s32.totalorder %s17, 0
      %p126 = por %p124, %p125
      %p127 = scmp.ne.s32.totalorder %s116, %s119
      %p128 = scmp.eq.s32.totalorder %s22, 1
      %p129 = por %p127, %p128
      %p130 = scmp.ne.s32.totalorder %s119, %s120
      %p131 = scmp.eq.s32.totalorder %s22, 0
      %p132 = por %p130, %p131
      %p133 = scmp.ne.s32.totalorder %s119, %s120
      %p134 = scmp.eq.s32.totalorder %s23, 1
      %p135 = por %p133, %p134
      %p137 = scmp.ne.s32.totalorder %s120, %s136
      %p138 = scmp.eq.s32.totalorder %s23, 0
      %p139 = por %p137, %p138
      %p140 = scmp.le.s32.totalorder 1, %s17
      %p141 = scmp.lt.s32.totalorder %s17, 3
      %p142 = pnand %p140, %p141
      %p143 = pneg %p142
      // Predicated region
      $region9: #{tpu_custom_call.1} parent=5 // pred_check
        _
      $region10: #{tpu_custom_call.1} parent=5 // pred_check_branch
        %145 = sbr.rel (%p142) target = $region12
      $region11: #{tpu_custom_call.1} parent=5 // pred_region
        %s146 = ssub.s32 %s17, 1
        // Predicated region
        $region13: #{tpu_custom_call.1} parent=11 // pred_check
          %p147 = pneg %p50
        $region14: #{tpu_custom_call.1} parent=11 // pred_check_branch
          %149 = sbr.rel (%p147) target = $region16
        $region15: #{tpu_custom_call.1} parent=11 // pred_region
          _
        $region16: #{tpu_custom_call.1} parent=11 // pred_fallthru
          _
        // Predicated region
        $region17: #{tpu_custom_call.1} parent=11 // pred_check
          %p150 = pneg %p104
        $region18: #{tpu_custom_call.1} parent=11 // pred_check_branch
          %152 = sbr.rel (%p150) target = $region20
        $region19: #{tpu_custom_call.1} parent=11 // pred_region
          %s154 = ssub.s32 128, 128
          %155 = vsyncadd [#allocation8], %s154
          %s156 = sadd.s32 %s26, 1
          %s157 = smul.addr %s156, 128
          %s158 = scalar_lea.hbm %s2, %s157
          %s160 = sshll.u32 [#allocation7], 4
          %s161 = int_to_ptr.vmem [resolvable:$true] %s160
          %163 = dma.hbm_to_vmem [thread:$0]  %s158, 128, %s161, [#allocation8]
        $region20: #{tpu_custom_call.1} parent=11 // pred_fallthru
          _
      $region12: #{tpu_custom_call.1} parent=5 // pred_fallthru
        _
      %p164 = scmp.lt.s32.totalorder %s17, 2
      // Predicated region
      $region21: #{tpu_custom_call.1} parent=5 // pred_check
        %p165 = pneg %p164
      $region22: #{tpu_custom_call.1} parent=5 // pred_check_branch
        %167 = sbr.rel (%p165) target = $region24
      $region23: #{tpu_custom_call.1} parent=5 // pred_region
        // Predicated region
        $region25: #{tpu_custom_call.1} parent=23 // pred_check
          %p168 = pneg %p72
        $region26: #{tpu_custom_call.1} parent=23 // pred_check_branch
          %170 = sbr.rel (%p168) target = $region28
        $region27: #{tpu_custom_call.1} parent=23 // pred_region
          %s171 = sand.u32 %s62, 1
          %s172 = scalar_lea.sflag [#allocation5], %s171
          %s173 = sand.u32 %s62, 1
          %s174 = smul.addr %s173, 8
          %s175 = scalar_lea.vmem [#allocation4], %s174
          %s177 = ssub.s32 128, 128
          %178 = vsyncadd %s172, %s177
          %s179 = sadd.s32 %s24, %s25
          %s180 = smul.addr %s179, 128
          %s181 = scalar_lea.hbm %s1, %s180
          %s183 = sshll.u32 %s175, 4
          %s184 = int_to_ptr.vmem [resolvable:$true] %s183
          %186 = dma.hbm_to_vmem [thread:$0]  %s181, 128, %s184, %s172
        $region28: #{tpu_custom_call.1} parent=23 // pred_fallthru
          _
      $region24: #{tpu_custom_call.1} parent=5 // pred_fallthru
        _
      %p187 = scmp.le.s32.totalorder 1, %s17
      %p188 = scmp.lt.s32.totalorder %s17, 3
      %p189 = pnand %p187, %p188
      %p190 = pneg %p189
      // Predicated region
      $region29: #{tpu_custom_call.1} parent=5 // pred_check
        _
      $region30: #{tpu_custom_call.1} parent=5 // pred_check_branch
        %192 = sbr.rel (%p189) target = $region32
      $region31: #{tpu_custom_call.1} parent=5 // pred_region
        %s193 = ssub.s32 %s17, 1
        %s194 = sand.u32 %s65, 1
        %s195 = scalar_lea.sflag [#allocation5], %s194
        %s196 = sand.u32 %s65, 1
        %s197 = smul.addr %s196, 8
        %s198 = scalar_lea.vmem [#allocation4], %s197
        // Predicated region
        $region33: #{tpu_custom_call.1} parent=31 // pred_check
          %p199 = pneg %p78
        $region34: #{tpu_custom_call.1} parent=31 // pred_check_branch
          %201 = sbr.rel (%p199) target = $region36
        $region35: #{tpu_custom_call.1} parent=31 // pred_region
          %202 = dma.done %s195, 128
        $region36: #{tpu_custom_call.1} parent=31 // pred_fallthru
          _
        // Predicated region
        $region37: #{tpu_custom_call.1} parent=31 // pred_check
          %p203 = pneg %p104
        $region38: #{tpu_custom_call.1} parent=31 // pred_check_branch
          %205 = sbr.rel (%p203) target = $region40
        $region39: #{tpu_custom_call.1} parent=31 // pred_region
          %206 = dma.done [#allocation8], 128
        $region40: #{tpu_custom_call.1} parent=31 // pred_fallthru
          _
        %p207 = pneg %p50
        %p208 = pneg %p47
        %s209 = sand.u32 %s65, 1
        %s210 = scalar_lea.sflag [#allocation5], %s209
        %s211 = sand.u32 %s65, 1
        %s212 = smul.addr %s211, 8
        %s213 = scalar_lea.vmem [#allocation4], %s212
        %p214 = pneg %p78
        %p215 = pneg %p75
        %p216 = pneg %p104
        %p217 = pneg %p101
        %p218 = pneg %p132
        %p219 = pneg %p129
        %s220 = sand.u32 %s119, 1
        %s221 = scalar_lea.sflag [#allocation6], %s220
        %s222 = sand.u32 %s119, 1
        %s223 = smul.addr %s222, 8
        %s224 = scalar_lea.vmem [#allocation9], %s223
        %p225 = scmp.eq.s32.totalorder %s27, 0
        // Predicated region
        $region41: #{tpu_custom_call.1} parent=31 // pred_check
          %p226 = pneg %p225
        $region42: #{tpu_custom_call.1} parent=31 // pred_check_branch
          %228 = sbr.rel (%p226) target = $region44
        $region43: #{tpu_custom_call.1} parent=31 // pred_region
          %v229 = vld [vmem:[#allocation7] sm:$0xff]
          %230 = vst [vmem:[#allocation2] sm:$0xff] %v229
        $region44: #{tpu_custom_call.1} parent=31 // pred_fallthru
          _
        %s231 = sld [smem:[#allocation3]]
        %v232 = vld [vmem:[%s198] sm:$0xff]
        %v233 = vld [vmem:[#allocation2] sm:$0xff]
        %v234 = vstv %s231
        %v235 = vmul.f32 %v233, %v234
        %v236 = vadd.f32 %v232, %v235
        %237 = vst [vmem:[%s224] sm:$0xff] %v236
        %p238 = scmp.ne.s32.totalorder %s27, 1
        // Predicated region
        $region45: #{tpu_custom_call.1} parent=31 // pred_check
          %p239 = pneg %p238
        $region46: #{tpu_custom_call.1} parent=31 // pred_check_branch
          %241 = sbr.rel (%p239) target = $region48
        $region47: #{tpu_custom_call.1} parent=31 // pred_region
          %v242 = vld [vmem:[%s198] sm:$0xff]
          %243 = vst [vmem:[#allocation2] sm:$0xff] %v242
        $region48: #{tpu_custom_call.1} parent=31 // pred_fallthru
          _
        %s244 = sand.u32 %s119, 1
        %s245 = scalar_lea.sflag [#allocation6], %s244
        %s246 = sand.u32 %s119, 1
        %s247 = smul.addr %s246, 8
        %s248 = scalar_lea.vmem [#allocation9], %s247
        // Predicated region
        $region49: #{tpu_custom_call.1} parent=31 // pred_check
          %p249 = pneg %p129
        $region50: #{tpu_custom_call.1} parent=31 // pred_check_branch
          %251 = sbr.rel (%p249) target = $region52
        $region51: #{tpu_custom_call.1} parent=31 // pred_region
          %s253 = ssub.s32 128, 128
          %254 = vsyncadd %s245, %s253
          %s255 = sadd.s32 %s26, %s27
          %s256 = smul.addr %s255, 128
          %s257 = scalar_lea.hbm %s3, %s256
          %s259 = sshll.u32 %s248, 4
          %s260 = int_to_ptr.vmem [resolvable:$true] %s259
          %262 = dma.vmem_to_hbm [thread:$0]  %s260, 128, %s257, %s245
        $region52: #{tpu_custom_call.1} parent=31 // pred_fallthru
          _
      $region32: #{tpu_custom_call.1} parent=5 // pred_fallthru
        _
      %p263 = scmp.le.s32.totalorder 2, %s17
      // Predicated region
      $region53: #{tpu_custom_call.1} parent=5 // pred_check
        %p264 = pneg %p263
      $region54: #{tpu_custom_call.1} parent=5 // pred_check_branch
        %266 = sbr.rel (%p264) target = $region56
      $region55: #{tpu_custom_call.1} parent=5 // pred_region
        %s267 = ssub.s32 %s17, 2
        // Predicated region
        $region57: #{tpu_custom_call.1} parent=55 // pred_check
          %p268 = pneg %p135
        $region58: #{tpu_custom_call.1} parent=55 // pred_check_branch
          %270 = sbr.rel (%p268) target = $region60
        $region59: #{tpu_custom_call.1} parent=55 // pred_region
          %s271 = sand.u32 %s120, 1
          %s272 = scalar_lea.sflag [#allocation6], %s271
          %s273 = sand.u32 %s120, 1
          %s274 = smul.addr %s273, 8
          %s275 = scalar_lea.vmem [#allocation9], %s274
          %276 = dma.done %s272, 128
        $region60: #{tpu_custom_call.1} parent=55 // pred_fallthru
          _
      $region56: #{tpu_custom_call.1} parent=5 // pred_fallthru
        _
    $region6: #{tpu_custom_call.1} parent=1 // loop_footer
      %s21 = sadd.s32 1, %s17
    $region7: #{tpu_custom_call.1} parent=1 // loop_footer_branch
      %16 = sbr.rel target = $region3
    $region8: #{tpu_custom_call.1} parent=1 // loop_exit
      _
    %277 = vsyncpa [#allocation5], 1
    %s278 = scalar_lea.sflag [#allocation5], 1
    %279 = vsyncpa %s278, 1
    %280 = vsyncpa [#allocation8], 1
    %281 = vsyncpa [#allocation6], 1
    %s282 = scalar_lea.sflag [#allocation6], 1
    %283 = vsyncpa %s282, 1

</llo_original>
